<compile_context>
chip_gen: v5e
topology: v5e:2x2
jax: 0.10.0
libtpu: 0.0.40
codegen_flags: <defaults>
</compile_context>

<pallas_src>
import functools

import jax
import jax.numpy as jnp
from jax.experimental import pallas as pl
from jax.experimental.pallas import tpu as pltpu


# Synthetic, deterministic stand-in for the external `config` object.
MIN_SQUARE_DIM = 24  # padding amount P; -1 disables padding
WINDOW_SIZE = 7      # stored by the module but unused in forward


def _pad_up_kernel(x_ref, o_ref, *, pad):
    # x_ref : (blk, H, W)            fused (N*C)-block of input planes
    # o_ref : (blk, H+2P, W+2P)      corresponding output block
    #
    # Build the zero-padded block entirely in-register and write each output
    # element exactly once with a single full-block store.
    blk, h, w = x_ref.shape
    w_out = w + 2 * pad

    x = x_ref[...]
    z_lane = jnp.zeros((blk, h, pad), x.dtype)
    mid = jnp.concatenate([z_lane, x, z_lane], axis=-1)      # (blk, H, W_out)
    z_rows = jnp.zeros((blk, pad, w_out), x.dtype)
    o_ref[...] = jnp.concatenate([z_rows, mid, z_rows], axis=1)


def _pick_block(nc, h, w, h_out, w_out, itemsize, budget_bytes=8 << 20):
    """Largest divisor of N*C whose (input + output) slab fits the byte budget.

    With double buffering the pipeline holds ~2x this budget (<= 16 MiB), well
    under the 32 MiB scoped-VMEM limit on v5e/v6e/v7x.
    """
    per_plane = (h * w + h_out * w_out) * itemsize
    max_blk = max(1, budget_bytes // per_plane)
    blk = 1
    for d in range(1, nc + 1):
        if nc % d == 0 and d <= max_blk:
            blk = d
    return blk


def pad_up(x: jax.Array,
           window_size: int = WINDOW_SIZE,
           min_square_dim: int = MIN_SQUARE_DIM) -> jax.Array:
    """Pallas implementation of PadUp.forward (NCHW input)."""
    del window_size  # unused in the reference forward pass
    n, c, h, w = x.shape

    # Shape check is static (trace-time), exactly like the PyTorch code
    # (`shape[3] < config.min_square_dim != -1`).
    if not (w < min_square_dim and min_square_dim != -1):
        return x

    p = min_square_dim
    h_out, w_out = h + 2 * p, w + 2 * p

    nc = n * c
    itemsize = jnp.dtype(x.dtype).itemsize
    blk = _pick_block(nc, h, w, h_out, w_out, itemsize)

    # Free reshape: NCHW is contiguous over (N, C), so (N*C, H, W) is a view.
    x_flat = x.reshape(nc, h, w)

    kernel = functools.partial(_pad_up_kernel, pad=p)

    # Pure data movement: advertise the byte traffic to XLA's scheduler.
    bytes_accessed = (nc * h * w + nc * h_out * w_out) * itemsize
    cost = pl.CostEstimate(flops=0, transcendentals=0,
                           bytes_accessed=bytes_accessed)

    out_flat = pl.pallas_call(
        kernel,
        out_shape=jax.ShapeDtypeStruct((nc, h_out, w_out), x.dtype),
        grid_spec=pltpu.PrefetchScalarGridSpec(
            num_scalar_prefetch=0,
            grid=(nc // blk,),
            in_specs=[pl.BlockSpec((blk, h, w), lambda i: (i, 0, 0))],
            out_specs=pl.BlockSpec((blk, h_out, w_out), lambda i: (i, 0, 0)),
        ),
        compiler_params=pltpu.CompilerParams(
            dimension_semantics=("parallel",),
            vmem_limit_bytes=32 << 20),
        cost_estimate=cost,
    )(x_flat)

    return out_flat.reshape(n, c, h_out, w_out)


def _reference_pad_up(x, min_square_dim=MIN_SQUARE_DIM):
    if not (x.shape[3] < min_square_dim and min_square_dim != -1):
        return x
    p = min_square_dim
    return jnp.pad(x, ((0, 0), (0, 0), (p, p), (p, p)))


if __name__ == "__main__":
    key = jax.random.PRNGKey(0)

    # Small NCHW input: W=16 < min_square_dim=24 → padding path runs in-kernel.
    x = jax.random.normal(key, (2, 4, 16, 16), dtype=jnp.float32)

    out = pad_up(x)
    out = jax.block_until_ready(out)

    ref = _reference_pad_up(x)
    assert out.shape == ref.shape == (2, 4, 64, 64), out.shape
    assert out.dtype == x.dtype
    assert jnp.array_equal(out, ref), "mismatch vs reference pad"

    # Pass-through path (W >= min_square_dim): returns input unchanged.
    key2 = jax.random.PRNGKey(1)
    x_big = jax.random.normal(key2, (2, 4, 32, 32), dtype=jnp.float32)
    out_big = jax.block_until_ready(pad_up(x_big))
    assert jnp.array_equal(out_big, x_big)

    print("KERNEL_OK")
</pallas_src>

<mosaic_0001>
module attributes {stable_mosaic.version = 11 : i64} {
  func.func @_pad_up_kernel(%arg0: i32, %arg1: memref<8x16x16xf32, #tpu.memory_space<vmem>>, %arg2: memref<8x64x64xf32, #tpu.memory_space<vmem>>) attributes {dimension_semantics = [#tpu.dimension_semantics<parallel>], iteration_bounds = array<i64: 1>, scalar_prefetch = 0 : i64, scratch_operands = 0 : i64, tpu.core_type = #tpu.core_type<tc>, window_params = [{transform_indices = @transform_0, window_bounds = array<i64: 8, 16, 16>}, {transform_indices = @transform_1, window_bounds = array<i64: 8, 64, 64>}]} {
    %c0 = arith.constant 0 : index
    %c0_0 = arith.constant 0 : index
    %c0_1 = arith.constant 0 : index
    %0 = vector.load %arg1[%c0, %c0_0, %c0_1] : memref<8x16x16xf32, #tpu.memory_space<vmem>>, vector<8x16x16xf32>
    %cst = arith.constant 0.000000e+00 : f32
    %1 = vector.broadcast %cst : f32 to vector<8x16x24xf32>
    %2 = tpu.concatenate %1, %0, %1 in 2 : vector<8x16x24xf32>, vector<8x16x16xf32>, vector<8x16x24xf32> -> vector<8x16x64xf32>
    %cst_2 = arith.constant 0.000000e+00 : f32
    %3 = vector.broadcast %cst_2 : f32 to vector<8x24x64xf32>
    %4 = tpu.concatenate %3, %2, %3 in 1 : vector<8x24x64xf32>, vector<8x16x64xf32>, vector<8x24x64xf32> -> vector<8x64x64xf32>
    %c0_3 = arith.constant 0 : index
    %c0_4 = arith.constant 0 : index
    %c0_5 = arith.constant 0 : index
    %5 = vector.load %arg2[%c0_3, %c0_4, %c0_5] : memref<8x64x64xf32, #tpu.memory_space<vmem>>, vector<8x64x64xf32>
    tpu.vector_store %arg2[%c0_3, %c0_4, %c0_5], %4 {strides = array<i32>} : memref<8x64x64xf32, #tpu.memory_space<vmem>>, vector<8x64x64xf32>,
    return
  }
  func.func @transform_0(%arg0: i32) -> (i32, i32, i32) {
    %c0_i32 = arith.constant 0 : i32
    %c0_i32_0 = arith.constant 0 : i32
    %c0_i32_1 = arith.constant 0 : i32
    return %arg0, %c0_i32, %c0_i32_0 : i32, i32, i32
  }
  func.func @transform_1(%arg0: i32) -> (i32, i32, i32) {
    %c0_i32 = arith.constant 0 : i32
    %c0_i32_0 = arith.constant 0 : i32
    %c0_i32_1 = arith.constant 0 : i32
    return %arg0, %c0_i32, %c0_i32_0 : i32, i32, i32
  }
}

</mosaic_0001>

<llo_original>
// kernel: tpu_custom_call.1
$region0: #{tpu_custom_call.1}
  #allocation0 [shape = 'u32[]', space=smem, size = 0x4, offset = 0x4, fixed_abs, tag = 'smem constant byte address 0x4 - core index']
  #allocation1 [shape = 'u32[72,128]{1,0:T(1,128)}', space=vmem, size = 0x9000, scoped, tag = 'internal scratch']
  %s0 = inlined_call_operand.hbm [shape: f32[8,16,16], index: 0, kind: input, shape index: {}]
  %s1 = inlined_call_operand.hbm [shape: f32[8,64,64], index: 1, kind: output, shape index: {}]
  %s2 = sld [smem:[#allocation0]]
  $region18: #{tpu_custom_call.1} parent=0
    _
  %s4 = ssub.s32 1, %s2
  %s5 = scalar_select 0, %s4, %s2
  $region1: #{tpu_custom_call.1} parent=0
    #allocation2 [shape = 'u8[65536]{0}', space=vmem, size = 0x10000, scoped, tag = 'input window, operand 0, single buffered']
    #allocation3 [shape = 's32[1]{0}', space=sflag, size = 0x4, scoped, tag = 'scoped memory for tpu_custom_call.1']
    #allocation4 [shape = 's32[1]{0}', space=sflag, size = 0x4, scoped, tag = 'scoped memory for tpu_custom_call.1']
    #allocation5 [shape = 'u8[262144]{0}', space=vmem, size = 0x40000, scoped, tag = 'output window, operand 0, single buffered']
    %6 = vsyncpa [#allocation3], 0
    %7 = vsyncpa [#allocation4], 0
    // Predicated region
    $region2: #{tpu_custom_call.1} parent=1 // pred_check
      _
    $region3: #{tpu_custom_call.1} parent=1 // pred_check_branch
      %9 = sbr.rel (0) target = $region5
    $region4: #{tpu_custom_call.1} parent=1 // pred_region
      %11 = vsyncadd [#allocation3], 0
      %s12 = sshll.u32 %s0, 4
      %s13 = int_to_ptr.hbm [resolvable:$true] %s12
      %s14 = sshll.u32 [#allocation2], 4
      %s15 = int_to_ptr.vmem [resolvable:$true] %s14
      %20 = dma.hbm_to_vmem [thread:$0]  %s13, 2048, %s15, [#allocation3], 128, 128, 8
    $region5: #{tpu_custom_call.1} parent=1 // pred_fallthru
      _
    // Predicated region
    $region6: #{tpu_custom_call.1} parent=1 // pred_check
      _
    $region7: #{tpu_custom_call.1} parent=1 // pred_check_branch
      %22 = sbr.rel (0) target = $region9
    $region8: #{tpu_custom_call.1} parent=1 // pred_region
      %24 = dma.done [#allocation3], 2048
    $region9: #{tpu_custom_call.1} parent=1 // pred_fallthru
      _
    %v25 = vld [vmem:[#allocation2] sm:$0xff]
    %v26 = vld [vmem:[#allocation2 + $0x8] sm:$0xff]
    %v27 = vld [vmem:[#allocation2 + $0x10] sm:$0xff]
    %v28 = vld [vmem:[#allocation2 + $0x18] sm:$0xff]
    %v29 = vld [vmem:[#allocation2 + $0x20] sm:$0xff]
    %v30 = vld [vmem:[#allocation2 + $0x28] sm:$0xff]
    %v31 = vld [vmem:[#allocation2 + $0x30] sm:$0xff]
    %v32 = vld [vmem:[#allocation2 + $0x38] sm:$0xff]
    %v33 = vld [vmem:[#allocation2 + $0x40] sm:$0xff]
    %v34 = vld [vmem:[#allocation2 + $0x48] sm:$0xff]
    %v35 = vld [vmem:[#allocation2 + $0x50] sm:$0xff]
    %v36 = vld [vmem:[#allocation2 + $0x58] sm:$0xff]
    %v37 = vld [vmem:[#allocation2 + $0x60] sm:$0xff]
    %v38 = vld [vmem:[#allocation2 + $0x68] sm:$0xff]
    %v39 = vld [vmem:[#allocation2 + $0x70] sm:$0xff]
    %v40 = vld [vmem:[#allocation2 + $0x78] sm:$0xff]
    %57 = vrot.lane.b32.xlu0 %v25, 24
    %v58 = vpop.permute.xlu0 %57
    %59 = vrot.lane.b32.xlu0 %v26, 24
    %v60 = vpop.permute.xlu0 %59
    %61 = vrot.lane.b32.xlu0 %v27, 24
    %v62 = vpop.permute.xlu0 %61
    %63 = vrot.lane.b32.xlu0 %v28, 24
    %v64 = vpop.permute.xlu0 %63
    %65 = vrot.lane.b32.xlu0 %v29, 24
    %v66 = vpop.permute.xlu0 %65
    %67 = vrot.lane.b32.xlu0 %v30, 24
    %v68 = vpop.permute.xlu0 %67
    %69 = vrot.lane.b32.xlu0 %v31, 24
    %v70 = vpop.permute.xlu0 %69
    %71 = vrot.lane.b32.xlu0 %v32, 24
    %v72 = vpop.permute.xlu0 %71
    %73 = vrot.lane.b32.xlu0 %v33, 24
    %v74 = vpop.permute.xlu0 %73
    %75 = vrot.lane.b32.xlu0 %v34, 24
    %v76 = vpop.permute.xlu0 %75
    %77 = vrot.lane.b32.xlu0 %v35, 24
    %v78 = vpop.permute.xlu0 %77
    %79 = vrot.lane.b32.xlu0 %v36, 24
    %v80 = vpop.permute.xlu0 %79
    %81 = vrot.lane.b32.xlu0 %v37, 24
    %v82 = vpop.permute.xlu0 %81
    %83 = vrot.lane.b32.xlu0 %v38, 24
    %v84 = vpop.permute.xlu0 %83
    %85 = vrot.lane.b32.xlu0 %v39, 24
    %v86 = vpop.permute.xlu0 %85
    %87 = vrot.lane.b32.xlu0 %v40, 24
    %v88 = vpop.permute.xlu0 %87
    %vm105 = vcmask 195584
    %v106 = vsel %vm105, 0.0, %v58
    %v107 = vsel %vm105, 0.0, %v60
    %v108 = vsel %vm105, 0.0, %v62
    %v109 = vsel %vm105, 0.0, %v64
    %v110 = vsel %vm105, 0.0, %v66
    %v111 = vsel %vm105, 0.0, %v68
    %v112 = vsel %vm105, 0.0, %v70
    %v113 = vsel %vm105, 0.0, %v72
    %v114 = vsel %vm105, 0.0, %v74
    %v115 = vsel %vm105, 0.0, %v76
    %v116 = vsel %vm105, 0.0, %v78
    %v117 = vsel %vm105, 0.0, %v80
    %v118 = vsel %vm105, 0.0, %v82
    %v119 = vsel %vm105, 0.0, %v84
    %v120 = vsel %vm105, 0.0, %v86
    %v121 = vsel %vm105, 0.0, %v88
    %vm122 = vcmask 326656
    %v123 = vsel %vm122, %v106, 0.0
    %v124 = vsel %vm122, %v107, 0.0
    %v125 = vsel %vm122, %v108, 0.0
    %v126 = vsel %vm122, %v109, 0.0
    %v127 = vsel %vm122, %v110, 0.0
    %v128 = vsel %vm122, %v111, 0.0
    %v129 = vsel %vm122, %v112, 0.0
    %v130 = vsel %vm122, %v113, 0.0
    %v131 = vsel %vm122, %v114, 0.0
    %v132 = vsel %vm122, %v115, 0.0
    %v133 = vsel %vm122, %v116, 0.0
    %v134 = vsel %vm122, %v117, 0.0
    %v135 = vsel %vm122, %v118, 0.0
    %v136 = vsel %vm122, %v119, 0.0
    %v137 = vsel %vm122, %v120, 0.0
    %v138 = vsel %vm122, %v121, 0.0
    %vm139 = vcmask 523264
    %140 = vst.msk [vmem:[#allocation5] sm:$0xff] %vm139, 0.0
    %141 = vst.msk [vmem:[#allocation5 + $0x8] sm:$0xff] %vm139, 0.0
    %142 = vst.msk [vmem:[#allocation5 + $0x10] sm:$0xff] %vm139, 0.0
    %143 = vst.msk [vmem:[#allocation5 + $0x18] sm:$0xff] %vm139, %v123
    %144 = vst.msk [vmem:[#allocation5 + $0x20] sm:$0xff] %vm139, %v124
    %145 = vst.msk [vmem:[#allocation5 + $0x28] sm:$0xff] %vm139, 0.0
    %146 = vst.msk [vmem:[#allocation5 + $0x30] sm:$0xff] %vm139, 0.0
    %147 = vst.msk [vmem:[#allocation5 + $0x38] sm:$0xff] %vm139, 0.0
    %148 = vst.msk [vmem:[#allocation5 + $0x40] sm:$0xff] %vm139, 0.0
    %149 = vst.msk [vmem:[#allocation5 + $0x48] sm:$0xff] %vm139, 0.0
    %150 = vst.msk [vmem:[#allocation5 + $0x50] sm:$0xff] %vm139, 0.0
    %151 = vst.msk [vmem:[#allocation5 + $0x58] sm:$0xff] %vm139, %v125
    %152 = vst.msk [vmem:[#allocation5 + $0x60] sm:$0xff] %vm139, %v126
    %153 = vst.msk [vmem:[#allocation5 + $0x68] sm:$0xff] %vm139, 0.0
    %154 = vst.msk [vmem:[#allocation5 + $0x70] sm:$0xff] %vm139, 0.0
    %155 = vst.msk [vmem:[#allocation5 + $0x78] sm:$0xff] %vm139, 0.0
    %156 = vst.msk [vmem:[#allocation5 + $0x80] sm:$0xff] %vm139, 0.0
    %157 = vst.msk [vmem:[#allocation5 + $0x88] sm:$0xff] %vm139, 0.0
    %158 = vst.msk [vmem:[#allocation5 + $0x90] sm:$0xff] %vm139, 0.0
    %159 = vst.msk [vmem:[#allocation5 + $0x98] sm:$0xff] %vm139, %v127
    %160 = vst.msk [vmem:[#allocation5 + $0xa0] sm:$0xff] %vm139, %v128
    %161 = vst.msk [vmem:[#allocation5 + $0xa8] sm:$0xff] %vm139, 0.0
    %162 = vst.msk [vmem:[#allocation5 + $0xb0] sm:$0xff] %vm139, 0.0
    %163 = vst.msk [vmem:[#allocation5 + $0xb8] sm:$0xff] %vm139, 0.0
    %164 = vst.msk [vmem:[#allocation5 + $0xc0] sm:$0xff] %vm139, 0.0
    %165 = vst.msk [vmem:[#allocation5 + $0xc8] sm:$0xff] %vm139, 0.0
    %166 = vst.msk [vmem:[#allocation5 + $0xd0] sm:$0xff] %vm139, 0.0
    %167 = vst.msk [vmem:[#allocation5 + $0xd8] sm:$0xff] %vm139, %v129
    %168 = vst.msk [vmem:[#allocation5 + $0xe0] sm:$0xff] %vm139, %v130
    %169 = vst.msk [vmem:[#allocation5 + $0xe8] sm:$0xff] %vm139, 0.0
    %170 = vst.msk [vmem:[#allocation5 + $0xf0] sm:$0xff] %vm139, 0.0
    %171 = vst.msk [vmem:[#allocation5 + $0xf8] sm:$0xff] %vm139, 0.0
    %172 = vst.msk [vmem:[#allocation5 + $0x100] sm:$0xff] %vm139, 0.0
    %173 = vst.msk [vmem:[#allocation5 + $0x108] sm:$0xff] %vm139, 0.0
    %174 = vst.msk [vmem:[#allocation5 + $0x110] sm:$0xff] %vm139, 0.0
    %175 = vst.msk [vmem:[#allocation5 + $0x118] sm:$0xff] %vm139, %v131
    %176 = vst.msk [vmem:[#allocation5 + $0x120] sm:$0xff] %vm139, %v132
    %177 = vst.msk [vmem:[#allocation5 + $0x128] sm:$0xff] %vm139, 0.0
    %178 = vst.msk [vmem:[#allocation5 + $0x130] sm:$0xff] %vm139, 0.0
    %179 = vst.msk [vmem:[#allocation5 + $0x138] sm:$0xff] %vm139, 0.0
    %180 = vst.msk [vmem:[#allocation5 + $0x140] sm:$0xff] %vm139, 0.0
    %181 = vst.msk [vmem:[#allocation5 + $0x148] sm:$0xff] %vm139, 0.0
    %182 = vst.msk [vmem:[#allocation5 + $0x150] sm:$0xff] %vm139, 0.0
    %183 = vst.msk [vmem:[#allocation5 + $0x158] sm:$0xff] %vm139, %v133
    %184 = vst.msk [vmem:[#allocation5 + $0x160] sm:$0xff] %vm139, %v134
    %185 = vst.msk [vmem:[#allocation5 + $0x168] sm:$0xff] %vm139, 0.0
    %186 = vst.msk [vmem:[#allocation5 + $0x170] sm:$0xff] %vm139, 0.0
    %187 = vst.msk [vmem:[#allocation5 + $0x178] sm:$0xff] %vm139, 0.0
    %188 = vst.msk [vmem:[#allocation5 + $0x180] sm:$0xff] %vm139, 0.0
    %189 = vst.msk [vmem:[#allocation5 + $0x188] sm:$0xff] %vm139, 0.0
    %190 = vst.msk [vmem:[#allocation5 + $0x190] sm:$0xff] %vm139, 0.0
    %191 = vst.msk [vmem:[#allocation5 + $0x198] sm:$0xff] %vm139, %v135
    %192 = vst.msk [vmem:[#allocation5 + $0x1a0] sm:$0xff] %vm139, %v136
    %193 = vst.msk [vmem:[#allocation5 + $0x1a8] sm:$0xff] %vm139, 0.0
    %194 = vst.msk [vmem:[#allocation5 + $0x1b0] sm:$0xff] %vm139, 0.0
    %195 = vst.msk [vmem:[#allocation5 + $0x1b8] sm:$0xff] %vm139, 0.0
    %196 = vst.msk [vmem:[#allocation5 + $0x1c0] sm:$0xff] %vm139, 0.0
    %197 = vst.msk [vmem:[#allocation5 + $0x1c8] sm:$0xff] %vm139, 0.0
    %198 = vst.msk [vmem:[#allocation5 + $0x1d0] sm:$0xff] %vm139, 0.0
    %199 = vst.msk [vmem:[#allocation5 + $0x1d8] sm:$0xff] %vm139, %v137
    %200 = vst.msk [vmem:[#allocation5 + $0x1e0] sm:$0xff] %vm139, %v138
    %201 = vst.msk [vmem:[#allocation5 + $0x1e8] sm:$0xff] %vm139, 0.0
    %202 = vst.msk [vmem:[#allocation5 + $0x1f0] sm:$0xff] %vm139, 0.0
    %203 = vst.msk [vmem:[#allocation5 + $0x1f8] sm:$0xff] %vm139, 0.0
    // Predicated region
    $region10: #{tpu_custom_call.1} parent=1 // pred_check
      _
    $region11: #{tpu_custom_call.1} parent=1 // pred_check_branch
      %205 = sbr.rel (0) target = $region13
    $region12: #{tpu_custom_call.1} parent=1 // pred_region
      %207 = vsyncadd [#allocation4], 0
      %s208 = sshll.u32 [#allocation5], 4
      %s209 = int_to_ptr.vmem [resolvable:$true] %s208
      %s210 = sshll.u32 %s1, 4
      %s211 = int_to_ptr.hbm [resolvable:$true] %s210
      %216 = dma.vmem_to_hbm [thread:$0]  %s209, 8192, %s211, [#allocation4], 128, 128, 8
    $region13: #{tpu_custom_call.1} parent=1 // pred_fallthru
      _
    // Predicated region
    $region14: #{tpu_custom_call.1} parent=1 // pred_check
      _
    $region15: #{tpu_custom_call.1} parent=1 // pred_check_branch
      %218 = sbr.rel (0) target = $region17
    $region16: #{tpu_custom_call.1} parent=1 // pred_region
      %220 = dma.done [#allocation4], 8192
    $region17: #{tpu_custom_call.1} parent=1 // pred_fallthru
      _
    %221 = vsyncpa [#allocation3], 1
    %222 = vsyncpa [#allocation4], 1

</llo_original>
